<compile_context>
chip_gen: v7x
topology: tpu7x:2x2x1
jax: 0.10.0
libtpu: 0.0.40
codegen_flags: <defaults>
</compile_context>

<pallas_src>
import jax
import jax.numpy as jnp
from jax.experimental import pallas as pl
from jax.experimental.pallas import tpu as pltpu


def _round_up(x, m):
    return ((x + m - 1) // m) * m


def _vmem_capacity_bytes():
    try:
        return int(pltpu.get_tpu_info().vmem_capacity_bytes)
    except Exception:
        return 64 * 1024 * 1024  # conservative fallback (v7x per-core size)


def _select_tiling(n, itemsize, block_rows=None):
    """Pick (tm, P, T, n_pad, vmem_cap): row tile, #row-range splits, tiles/split."""
    sub = 8 if itemsize >= 4 else (16 if itemsize == 2 else 32)
    cap = _vmem_capacity_bytes()
    if block_rows is not None:
        tm = _round_up(max(int(block_rows), sub), sub)
    else:
        # Biggest double-buffered (tm, n) tile that fits the budget.
        budget = min(cap // 2, 40 * 1024 * 1024)
        tm = budget // (2 * n * itemsize)
        tm = max(sub, (tm // sub) * sub)
        tm = min(tm, 2048)
    tm = min(tm, _round_up(n, sub))
    num_tiles = -(-n // tm)                       # cdiv
    num_splits = 2 if num_tiles >= 2 else 1       # leading "parallel" axis (2 TCs on v7x)
    tiles_per_split = -(-num_tiles // num_splits)
    n_pad = num_splits * tiles_per_split * tm
    return tm, num_splits, tiles_per_split, n_pad, cap


def _make_score_loss_kernel(max_violation, use_mask, tiles_per_split, tm):
    def kernel(s_ref, dcol_ref, drow_ref, *out_refs):
        if max_violation:
            col_ref, row_ref = out_refs
        else:
            (col_ref,) = out_refs
        j = pl.program_id(1)

        @pl.when(j == 0)
        def _init():
            col_ref[...] = jnp.zeros_like(col_ref)

        s = s_ref[...].astype(jnp.float32)                 # (tm, n)
        # margin pre-folded into diag side inputs: dcol/drow = diag - margin
        cost_s = jnp.maximum(s - dcol_ref[...], 0.0)       # caption retrieval hinge
        cost_im = jnp.maximum(s - drow_ref[...], 0.0)      # image retrieval hinge

        n = s.shape[1]
        if max_violation:
            if use_mask:  # only needed when margin > 0 (diag hinge is 0 otherwise)
                gtile = pl.program_id(0) * tiles_per_split + j
                row_g = gtile * tm + jax.lax.broadcasted_iota(jnp.int32, s.shape, 0)
                col_g = jax.lax.broadcasted_iota(jnp.int32, s.shape, 1)
                eye = row_g == col_g
                cost_s = jnp.where(eye, 0.0, cost_s)
                cost_im = jnp.where(eye, 0.0, cost_im)
            # per-row max written straight to this tile's own output block
            row_ref[...] = jnp.max(cost_s, axis=1, keepdims=True)
            # running per-column max folded onto 8 sublanes (VPU-only reduction)
            folded = jnp.max(cost_im.reshape(tm // 8, 8, n), axis=0)
            col_ref[...] = jnp.maximum(col_ref[...], folded)
        else:
            # fused per-column partial sums folded onto 8 sublanes (VPU-only);
            # the single cross-lane reduce happens once, in the wrapper
            folded = jnp.sum((cost_s + cost_im).reshape(tm // 8, 8, n), axis=0)
            col_ref[...] = col_ref[...] + folded

    return kernel


def score_loss(S, margin=0.0, max_violation=False, norm=True, block_rows=None):
    """Pallas-backed equivalent of Score_Loss(margin, ...).forward(S)."""
    N = S.shape[0]
    assert S.shape == (N, N), "Score_Loss expects a square score matrix"
    margin = float(margin)
    max_violation = bool(max_violation)

    itemsize = jnp.dtype(S.dtype).itemsize
    tm, P, T, N_pad, cap = _select_tiling(N, itemsize, block_rows)

    # Diagonal hoisted to the wrapper, margin pre-folded in (f32 side inputs).
    diag = jnp.diagonal(S).astype(jnp.float32)              # (N,)
    dshift = diag - jnp.float32(margin)
    drow = dshift.reshape(1, N)
    if N_pad > N:
        # Sentinel pad rows contribute exactly zero to both hinge matrices.
        pad = N_pad - N
        S_in = jnp.concatenate(
            [S, jnp.full((pad, N), -1e30, dtype=S.dtype)], axis=0)
        dcol = jnp.concatenate(
            [dshift, jnp.zeros((pad,), jnp.float32)]).reshape(N_pad, 1)
    else:
        S_in = S
        dcol = dshift.reshape(N, 1)

    # Scoped-VMEM limit sized to the chosen tiling (double-buffered S tile +
    # side inputs + outputs) with headroom, capped below physical capacity.
    est = (2 * tm * N * itemsize            # S row-tile double buffer
           + 2 * (tm + N) * 4               # dcol + drow
           + 2 * (8 * N + tm) * 4)          # col_out + row_out blocks
    vmem_limit = int(max(min(cap - (8 << 20), est + (16 << 20)), 8 << 20))

    kernel = _make_score_loss_kernel(max_violation, margin > 0.0, T, tm)

    col_shape = jax.ShapeDtypeStruct((P * 8, N), jnp.float32)
    col_spec = pl.BlockSpec((8, N), lambda p, j: (p, 0))
    if max_violation:
        out_shape = (col_shape, jax.ShapeDtypeStruct((N_pad, 1), jnp.float32))
        out_specs = [col_spec,
                     pl.BlockSpec((tm, 1), lambda p, j: (p * T + j, 0))]
    else:
        out_shape = col_shape
        out_specs = col_spec

    res = pl.pallas_call(
        kernel,
        out_shape=out_shape,
        grid_spec=pltpu.PrefetchScalarGridSpec(
            num_scalar_prefetch=0,
            grid=(P, T),
            in_specs=[
                pl.BlockSpec((tm, N), lambda p, j: (p * T + j, 0)),  # S row tile
                pl.BlockSpec((tm, 1), lambda p, j: (p * T + j, 0)),  # diag - margin (col)
                pl.BlockSpec((1, N), lambda p, j: (0, 0)),           # diag - margin (row)
            ],
            out_specs=out_specs,
        ),
        compiler_params=pltpu.CompilerParams(
            dimension_semantics=("parallel", "arbitrary"),
            vmem_limit_bytes=vmem_limit),
    )(S_in, dcol, drow)

    if max_violation:
        col_out, row_out = res
        # column max over the P splits x 8 sublane partials, plus per-row maxes
        loss = jnp.sum(jnp.max(col_out, axis=0)) + jnp.sum(row_out)
    else:
        col_out = res
        # subtract the diagonal contribution exactly as computed in-kernel
        diag_hinge = jnp.maximum(diag - dshift, 0.0)
        loss = jnp.sum(col_out) - 2.0 * jnp.sum(diag_hinge)

    if norm:
        loss = loss / jnp.float32(N * N)
    return loss


def _score_loss_ref(S, margin=0.0, max_violation=False, norm=True):
    """Pure-JAX reference mirroring the PyTorch forward."""
    S = S.astype(jnp.float32)
    n = S.shape[0]
    diag = jnp.diag(S).reshape(n, 1)
    cost_s = jnp.maximum(margin + S - diag, 0.0)
    cost_im = jnp.maximum(margin + S - diag.T, 0.0)
    eye = jnp.eye(n, dtype=bool)
    cost_s = jnp.where(eye, 0.0, cost_s)
    cost_im = jnp.where(eye, 0.0, cost_im)
    if max_violation:
        cost_s = jnp.max(cost_s, axis=1)
        cost_im = jnp.max(cost_im, axis=0)
    loss = jnp.sum(cost_s) + jnp.sum(cost_im)
    if norm:
        loss = loss / (n * n)
    return loss


if __name__ == "__main__":
    def make_scores(key, n, d=32, dtype=jnp.float32):
        k1, k2 = jax.random.split(key)
        im = jax.random.normal(k1, (n, d), dtype=jnp.float32)
        tx = jax.random.normal(k2, (n, d), dtype=jnp.float32)
        im = im / jnp.linalg.norm(im, axis=1, keepdims=True)
        tx = tx / jnp.linalg.norm(tx, axis=1, keepdims=True)
        return (im @ tx.T).astype(dtype)   # cosine_sim(im, tx)

    root = jax.random.PRNGKey(0)
    k0, k1, k2, k3 = jax.random.split(root, 4)

    # Case 1: module defaults at a small batch size (single tile, P=1).
    S8 = make_scores(k0, 8)
    out = jax.block_until_ready(
        score_loss(S8, margin=0.0, max_violation=False, norm=True))
    ref = _score_loss_ref(S8, margin=0.0, max_violation=False, norm=True)
    assert jnp.allclose(out, ref, atol=1e-5, rtol=1e-5), (out, ref)

    # Case 2: nonzero margin, both reduction modes, multi-tile grid with the
    # 2-way "parallel" row split (32 rows / 8-row tiles -> P=2, T=2).
    S32 = make_scores(k1, 32)
    for mv in (False, True):
        out = jax.block_until_ready(
            score_loss(S32, margin=0.2, max_violation=mv, norm=True,
                       block_rows=8))
        ref = _score_loss_ref(S32, margin=0.2, max_violation=mv, norm=True)
        assert jnp.allclose(out, ref, atol=1e-5, rtol=1e-5), (mv, out, ref)

    # Case 3: bf16 input accepted directly (hinge math stays f32 in-kernel).
    Sb = make_scores(k2, 16, dtype=jnp.bfloat16)
    out = jax.block_until_ready(
        score_loss(Sb, margin=0.1, max_violation=False, norm=False))
    ref = _score_loss_ref(Sb.astype(jnp.float32), margin=0.1,
                          max_violation=False, norm=False)
    assert jnp.allclose(out, ref, atol=1e-4, rtol=1e-4), (out, ref)

    # Case 4: N not a multiple of the tile (20 rows, 8-row tiles) exercises
    # the zero-contribution row padding plus both reduction modes.
    S20 = make_scores(k3, 20)
    for mv in (False, True):
        out = jax.block_until_ready(
            score_loss(S20, margin=0.15, max_violation=mv, norm=True,
                       block_rows=8))
        ref = _score_loss_ref(S20, margin=0.15, max_violation=mv, norm=True)
        assert jnp.allclose(out, ref, atol=1e-5, rtol=1e-5), (mv, out, ref)

    print("KERNEL_OK")
</pallas_src>

<mosaic_0001>
module attributes {stable_mosaic.version = 11 : i64} {
  func.func @kernel(%arg0: i32, %arg1: i32, %arg2: memref<8x8xf32, #tpu.memory_space<vmem>>, %arg3: memref<8x1xf32, #tpu.memory_space<vmem>>, %arg4: memref<1x8xf32, #tpu.memory_space<vmem>>, %arg5: memref<8x8xf32, #tpu.memory_space<vmem>>) attributes {dimension_semantics = [#tpu.dimension_semantics<parallel>, #tpu.dimension_semantics<arbitrary>], iteration_bounds = array<i64: 1, 1>, scalar_prefetch = 0 : i64, scratch_operands = 0 : i64, tpu.core_type = #tpu.core_type<tc>, window_params = [{transform_indices = @transform_0, window_bounds = array<i64: 8, 8>}, {transform_indices = @transform_1, window_bounds = array<i64: 8, 1>}, {pipeline_mode = #tpu.pipeline_mode<synchronous>, transform_indices = @transform_2, window_bounds = array<i64: 1, 8>}, {transform_indices = @transform_3, window_bounds = array<i64: 8, 8>}]} {
    %c0_i32 = arith.constant 0 : i32
    %0 = arith.cmpi eq, %arg1, %c0_i32 : i32
    %1 = arith.extui %0 : i1 to i32
    %c0_i32_0 = arith.constant 0 : i32
    %2 = arith.cmpi ne, %1, %c0_i32_0 : i32
    scf.if %2 {
      %cst_12 = arith.constant 0.000000e+00 : f32
      %20 = vector.broadcast %cst_12 : f32 to vector<8x8xf32>
      %c0_13 = arith.constant 0 : index
      %c0_14 = arith.constant 0 : index
      %21 = vector.load %arg5[%c0_13, %c0_14] : memref<8x8xf32, #tpu.memory_space<vmem>>, vector<8x8xf32>
      tpu.vector_store %arg5[%c0_13, %c0_14], %20 {strides = array<i32>} : memref<8x8xf32, #tpu.memory_space<vmem>>, vector<8x8xf32>,
    } else {
    }
    %c0 = arith.constant 0 : index
    %c0_1 = arith.constant 0 : index
    %3 = vector.load %arg2[%c0, %c0_1] : memref<8x8xf32, #tpu.memory_space<vmem>>, vector<8x8xf32>
    %c0_2 = arith.constant 0 : index
    %c0_3 = arith.constant 0 : index
    %4 = vector.load %arg3[%c0_2, %c0_3] : memref<8x1xf32, #tpu.memory_space<vmem>>, vector<8x1xf32>
    %5 = vector.broadcast %4 : vector<8x1xf32> to vector<8x8xf32>
    %6 = arith.subf %3, %5 : vector<8x8xf32>
    %cst = arith.constant 0.000000e+00 : f32
    %7 = vector.broadcast %cst : f32 to vector<8x8xf32>
    %8 = arith.maximumf %6, %7 : vector<8x8xf32>
    %c0_4 = arith.constant 0 : index
    %c0_5 = arith.constant 0 : index
    %9 = vector.load %arg4[%c0_4, %c0_5] : memref<1x8xf32, #tpu.memory_space<vmem>>, vector<1x8xf32>
    %10 = vector.broadcast %9 : vector<1x8xf32> to vector<8x8xf32>
    %11 = arith.subf %3, %10 : vector<8x8xf32>
    %cst_6 = arith.constant 0.000000e+00 : f32
    %12 = vector.broadcast %cst_6 : f32 to vector<8x8xf32>
    %13 = arith.maximumf %11, %12 : vector<8x8xf32>
    %14 = arith.addf %8, %13 : vector<8x8xf32>
    %15 = vector.shape_cast %14 : vector<8x8xf32> to vector<1x8x8xf32>
    %cst_7 = arith.constant dense<0.000000e+00> : vector<8x8xf32>
    %16 = vector.multi_reduction <add>, %15, %cst_7 [0] : vector<1x8x8xf32> to vector<8x8xf32>
    %c0_8 = arith.constant 0 : index
    %c0_9 = arith.constant 0 : index
    %17 = vector.load %arg5[%c0_8, %c0_9] : memref<8x8xf32, #tpu.memory_space<vmem>>, vector<8x8xf32>
    %18 = arith.addf %17, %16 : vector<8x8xf32>
    %c0_10 = arith.constant 0 : index
    %c0_11 = arith.constant 0 : index
    %19 = vector.load %arg5[%c0_10, %c0_11] : memref<8x8xf32, #tpu.memory_space<vmem>>, vector<8x8xf32>
    tpu.vector_store %arg5[%c0_10, %c0_11], %18 {strides = array<i32>} : memref<8x8xf32, #tpu.memory_space<vmem>>, vector<8x8xf32>,
    return
  }
  func.func @transform_0(%arg0: i32, %arg1: i32) -> (i32, i32) {
    %c1_i32 = arith.constant 1 : i32
    %0 = arith.muli %arg0, %c1_i32 : i32
    %1 = arith.addi %0, %arg1 : i32
    %c0_i32 = arith.constant 0 : i32
    %c0_i32_0 = arith.constant 0 : i32
    return %1, %c0_i32 : i32, i32
  }
  func.func @transform_1(%arg0: i32, %arg1: i32) -> (i32, i32) {
    %c1_i32 = arith.constant 1 : i32
    %0 = arith.muli %arg0, %c1_i32 : i32
    %1 = arith.addi %0, %arg1 : i32
    %c0_i32 = arith.constant 0 : i32
    %c0_i32_0 = arith.constant 0 : i32
    return %1, %c0_i32 : i32, i32
  }
  func.func @transform_2(%arg0: i32, %arg1: i32) -> (i32, i32) {
    %c0_i32 = arith.constant 0 : i32
    %c0_i32_0 = arith.constant 0 : i32
    %c0_i32_1 = arith.constant 0 : i32
    return %c0_i32, %c0_i32_0 : i32, i32
  }
  func.func @transform_3(%arg0: i32, %arg1: i32) -> (i32, i32) {
    %c0_i32 = arith.constant 0 : i32
    %c0_i32_0 = arith.constant 0 : i32
    return %arg0, %c0_i32 : i32, i32
  }
}

</mosaic_0001>

<llo_original>
// kernel: tpu_custom_call.1
$region0: #{tpu_custom_call.1}
  #allocation0 [shape = 'u32[]', space=smem, size = 0x4, offset = 0x4, fixed_abs, tag = 'smem constant byte address 0x4 - core index']
  #allocation1 [shape = 'u32[144,128]{1,0:T(1,128)}', space=vmem, size = 0x12000, scoped, tag = 'internal scratch']
  %s0 = inlined_call_operand.vmem [shape: f32[8,8], index: 0, kind: input, shape index: {}]
  %s1 = inlined_call_operand.vmem [shape: f32[8,1], index: 1, kind: input, shape index: {}]
  %s2 = inlined_call_operand.vmem [shape: f32[1,8], index: 2, kind: input, shape index: {}]
  %s3 = inlined_call_operand.hbm [shape: f32[8,8], index: 3, kind: output, shape index: {}]
  %s4 = sld [smem:[#allocation0]]
  $region26: #{tpu_custom_call.1} parent=0
    _
  %s6 = ssub.s32 1, %s4
  %s7 = scalar_select 0, %s6, %s4
  $region1: #{tpu_custom_call.1} parent=0
    #allocation2 [shape = 'u8[4096]{0}', space=vmem, size = 0x1000, scoped, tag = 'output window, operand 0, single buffered']
    #allocation3 [shape = 's32[1]{0}', space=sflag, size = 0x4, scoped, tag = 'scoped memory for tpu_custom_call.1']
    %8 = vsyncpa [#allocation3], 0
    // Predicated region
    $region2: #{tpu_custom_call.1} parent=1 // pred_check
      _
    $region3: #{tpu_custom_call.1} parent=1 // pred_check_branch
      %10 = sbr.rel (0) target = $region5
    $region4: #{tpu_custom_call.1} parent=1 // pred_region
      %s11 = sadd.s32 0, 0
      %p12 = scmp.lt.s32.totalorder %s11, 0
      %s13 = scalar_select %p12, %s11, 0
      %s14 = smul.addr %s13, 8
      %s15 = scalar_lea.vmem %s0, %s14
      %s16 = sadd.s32 0, 0
    $region5: #{tpu_custom_call.1} parent=1 // pred_fallthru
      _
    // Predicated region
    $region6: #{tpu_custom_call.1} parent=1 // pred_check
      _
    $region7: #{tpu_custom_call.1} parent=1 // pred_check_branch
      %18 = sbr.rel (0) target = $region9
    $region8: #{tpu_custom_call.1} parent=1 // pred_region
      %s19 = sadd.s32 0, 0
      %p20 = scmp.lt.s32.totalorder %s19, 0
      %s21 = scalar_select %p20, %s19, 0
      %s22 = smul.addr %s21, 8
      %s23 = scalar_lea.vmem %s1, %s22
      %s24 = sadd.s32 0, 0
    $region9: #{tpu_custom_call.1} parent=1 // pred_fallthru
      _
    // Predicated region
    $region10: #{tpu_custom_call.1} parent=1 // pred_check
      _
    $region11: #{tpu_custom_call.1} parent=1 // pred_check_branch
      %26 = sbr.rel (0) target = $region13
    $region12: #{tpu_custom_call.1} parent=1 // pred_region
      _
    $region13: #{tpu_custom_call.1} parent=1 // pred_fallthru
      _
    %s27 = sadd.s32 0, 0
    %p28 = scmp.lt.s32.totalorder %s27, 0
    %s29 = scalar_select %p28, %s27, 0
    %s30 = smul.addr %s29, 8
    %s31 = scalar_lea.vmem %s0, %s30
    %s32 = sadd.s32 0, 0
    %p33 = scmp.lt.s32.totalorder %s32, 0
    %s34 = scalar_select %p33, %s32, 0
    %s35 = smul.addr %s34, 8
    %s36 = scalar_lea.vmem %s1, %s35
    %s37 = sadd.s32 0, 0
    %p38 = scmp.lt.s32.totalorder %s37, 0
    %s39 = scalar_select %p38, %s37, 0
    %s40 = smul.addr %s39, 8
    %s41 = scalar_lea.vmem %s0, %s40
    %s42 = sadd.s32 0, 0
    %s43 = sadd.s32 0, 0
    %p44 = scmp.lt.s32.totalorder %s43, 0
    %s45 = scalar_select %p44, %s43, 0
    %s46 = smul.addr %s45, 8
    %s47 = scalar_lea.vmem %s1, %s46
    %s48 = sadd.s32 0, 0
    %p49 = scmp.eq.s32.totalorder 0, 0
    // Predicated region
    $region14: #{tpu_custom_call.1} parent=1 // pred_check
      %p50 = pneg %p49
    $region15: #{tpu_custom_call.1} parent=1 // pred_check_branch
      %52 = sbr.rel (%p50) target = $region17
    $region16: #{tpu_custom_call.1} parent=1 // pred_region
      %vm53 = vcmask 64512
      %54 = vst.msk [vmem:[#allocation2] sm:$0xff] %vm53, 0.0
    $region17: #{tpu_custom_call.1} parent=1 // pred_fallthru
      _
    %v55 = vld [vmem:[%s41] sm:$0xff]
    %v56 = vld [vmem:[%s47] sm:$0xff]
    %58 = vset.pattern.permute.xlu0 0
    %59 = vperm.xlu0 %58, %v56
    %v60 = vpop.permute.xlu0 %59
    %v62 = vsub.f32 %v55, %v60
    %v63 = vmax.f32 %v62, 0.0
    %v64 = vld [vmem:[%s2] sm:$0x1]
    %v66 = vlaneseq
    %v67 = vshrl.u32 %v66, 7
    %v68 = vsub.s32 0, %v67
    %v69 = vrot.slane %v64, %v68
    %v71 = vsub.f32 %v55, %v69
    %v72 = vmax.f32 %v71, 0.0
    %v73 = vadd.f32 %v63, %v72
    %v74 = vadd.f32 %v73, 0.0
    %v75 = vld [vmem:[#allocation2] sm:$0xff]
    %v76 = vadd.f32 %v75, %v74
    %vm77 = vcmask 64512
    %78 = vst.msk [vmem:[#allocation2] sm:$0xff] %vm77, %v76
    // Predicated region
    $region18: #{tpu_custom_call.1} parent=1 // pred_check
      _
    $region19: #{tpu_custom_call.1} parent=1 // pred_check_branch
      %80 = sbr.rel (0) target = $region21
    $region20: #{tpu_custom_call.1} parent=1 // pred_region
      %s82 = ssub.s32 128, 128
      %83 = vsyncadd [#allocation3], %s82
      %s85 = sshll.u32 [#allocation2], 4
      %s86 = int_to_ptr.vmem [resolvable:$true] %s85
      %88 = dma.vmem_to_hbm [thread:$0]  %s86, 128, %s3, [#allocation3]
    $region21: #{tpu_custom_call.1} parent=1 // pred_fallthru
      _
    // Predicated region
    $region22: #{tpu_custom_call.1} parent=1 // pred_check
      _
    $region23: #{tpu_custom_call.1} parent=1 // pred_check_branch
      %90 = sbr.rel (0) target = $region25
    $region24: #{tpu_custom_call.1} parent=1 // pred_region
      %91 = dma.done [#allocation3], 128
    $region25: #{tpu_custom_call.1} parent=1 // pred_fallthru
      _
    %92 = vsyncpa [#allocation3], 1

</llo_original>
